<compile_context>
chip_gen: v5e
topology: v5e:2x2
jax: 0.10.0
libtpu: 0.0.40
codegen_flags: <defaults>
</compile_context>

<pallas_src>
import jax
import jax.numpy as jnp
from jax import lax
from jax.experimental import pallas as pl
from jax.experimental.pallas import tpu as pltpu


def _matmul_t(x, w):
    """x: [M, K], w: [N, K] (PyTorch Linear layout). Returns x @ w.T in f32."""
    return lax.dot_general(
        x,
        w,
        dimension_numbers=(((1,), (1,)), ((), ())),
        preferred_element_type=jnp.float32,
        precision=lax.Precision.HIGHEST,
    )


def generator_kernel(z_ref, w1_ref, w2_ref, w3_ref, w4_ref, out_ref):
    # Entire forward pass fused per batch tile:
    #   matmul -> relu -> matmul -> relu -> matmul -> relu -> matmul.
    x = z_ref[...]
    h = jnp.maximum(_matmul_t(x, w1_ref[...]), 0.0)
    h = jnp.maximum(_matmul_t(h, w2_ref[...]), 0.0)
    h = jnp.maximum(_matmul_t(h, w3_ref[...]), 0.0)
    out_ref[...] = _matmul_t(h, w4_ref[...]).astype(out_ref.dtype)


def generator_forward(z, w1, w2, w3, w4, *, block_b=512):
    """z: [B, D0]; w_i: PyTorch-style [out, in] weights. Returns [B, D_out]."""
    B, d0 = z.shape
    d_out = w4.shape[0]

    # Batch tile: multiple of 8 (f32 sublane), capped at block_b.
    if B >= block_b:
        tb = block_b
    else:
        tb = ((B + 7) // 8) * 8

    n_tiles = pl.cdiv(B, tb)
    b_padded = n_tiles * tb
    if b_padded != B:
        z = jnp.pad(z, ((0, b_padded - B), (0, 0)))

    out = pl.pallas_call(
        generator_kernel,
        out_shape=jax.ShapeDtypeStruct((b_padded, d_out), jnp.float32),
        grid_spec=pl.GridSpec(
            grid=(n_tiles,),
            in_specs=[
                # Batch-tiled input: new tile each grid step (auto-pipelined).
                pl.BlockSpec((tb, d0), lambda i: (i, 0)),
                # Weights: constant index_map -> VMEM-resident across steps.
                pl.BlockSpec(w1.shape, lambda i: (0, 0)),
                pl.BlockSpec(w2.shape, lambda i: (0, 0)),
                pl.BlockSpec(w3.shape, lambda i: (0, 0)),
                pl.BlockSpec(w4.shape, lambda i: (0, 0)),
            ],
            out_specs=pl.BlockSpec((tb, d_out), lambda i: (i, 0)),
        ),
        compiler_params=pltpu.CompilerParams(
            dimension_semantics=("parallel",)
        ),
    )(z, w1, w2, w3, w4)

    return out[:B]


def reference_forward(z, w1, w2, w3, w4):
    x = jnp.maximum(_matmul_t(z, w1), 0.0)
    x = jnp.maximum(_matmul_t(x, w2), 0.0)
    x = jnp.maximum(_matmul_t(x, w3), 0.0)
    return _matmul_t(x, w4)


if __name__ == "__main__":
    # h_dim = [in1, out1, in2, out2, in3, out3, in4, out4]
    h_dim = [32, 64, 64, 128, 128, 64, 64, 16]

    key = jax.random.PRNGKey(0)
    kz, k1, k2, k3, k4, kz2 = jax.random.split(key, 6)

    def init_linear(k, fan_out, fan_in):
        # Deterministic init mimicking nn.Linear's uniform(-1/sqrt(fan_in), ...)
        bound = 1.0 / (fan_in ** 0.5)
        return jax.random.uniform(
            k, (fan_out, fan_in), dtype=jnp.float32, minval=-bound, maxval=bound
        )

    w1 = init_linear(k1, h_dim[1], h_dim[0])
    w2 = init_linear(k2, h_dim[3], h_dim[2])
    w3 = init_linear(k3, h_dim[5], h_dim[4])
    w4 = init_linear(k4, h_dim[7], h_dim[6])

    # Test 1: small batch (single grid step, TB = 8).
    batch = 8
    z = jax.random.normal(kz, (batch, h_dim[0]), dtype=jnp.float32)
    out = jax.block_until_ready(generator_forward(z, w1, w2, w3, w4))
    ref = reference_forward(z, w1, w2, w3, w4)
    assert out.shape == (batch, h_dim[7])
    assert jnp.allclose(out, ref, atol=1e-5, rtol=1e-5)

    # Test 2: non-multiple batch with small tile to exercise padding + the
    # multi-step batch-tiled grid (grid = (3,) here).
    batch2 = 300
    z2 = jax.random.normal(kz2, (batch2, h_dim[0]), dtype=jnp.float32)
    out2 = jax.block_until_ready(
        generator_forward(z2, w1, w2, w3, w4, block_b=128)
    )
    ref2 = reference_forward(z2, w1, w2, w3, w4)
    assert out2.shape == (batch2, h_dim[7])
    assert jnp.allclose(out2, ref2, atol=1e-5, rtol=1e-5)

    print("KERNEL_OK")
</pallas_src>

<mosaic_0001>
module attributes {stable_mosaic.version = 11 : i64} {
  func.func @generator_kernel(%arg0: i32, %arg1: memref<8x32xf32, #tpu.memory_space<vmem>>, %arg2: memref<64x32xf32, #tpu.memory_space<vmem>>, %arg3: memref<128x64xf32, #tpu.memory_space<vmem>>, %arg4: memref<64x128xf32, #tpu.memory_space<vmem>>, %arg5: memref<16x64xf32, #tpu.memory_space<vmem>>, %arg6: memref<8x16xf32, #tpu.memory_space<vmem>>) attributes {dimension_semantics = [#tpu.dimension_semantics<parallel>], iteration_bounds = array<i64: 1>, scalar_prefetch = 0 : i64, scratch_operands = 0 : i64, tpu.core_type = #tpu.core_type<tc>, window_params = [{transform_indices = @transform_0, window_bounds = array<i64: 8, 32>}, {pipeline_mode = #tpu.pipeline_mode<synchronous>, transform_indices = @transform_1, window_bounds = array<i64: 64, 32>}, {pipeline_mode = #tpu.pipeline_mode<synchronous>, transform_indices = @transform_2, window_bounds = array<i64: 128, 64>}, {pipeline_mode = #tpu.pipeline_mode<synchronous>, transform_indices = @transform_3, window_bounds = array<i64: 64, 128>}, {pipeline_mode = #tpu.pipeline_mode<synchronous>, transform_indices = @transform_4, window_bounds = array<i64: 16, 64>}, {transform_indices = @transform_5, window_bounds = array<i64: 8, 16>}]} {
    %c0 = arith.constant 0 : index
    %c0_0 = arith.constant 0 : index
    %0 = vector.load %arg1[%c0, %c0_0] : memref<8x32xf32, #tpu.memory_space<vmem>>, vector<8x32xf32>
    %c0_1 = arith.constant 0 : index
    %c0_2 = arith.constant 0 : index
    %1 = vector.load %arg2[%c0_1, %c0_2] : memref<64x32xf32, #tpu.memory_space<vmem>>, vector<64x32xf32>
    %cst = arith.constant dense<0.000000e+00> : vector<8x64xf32>
    %2 = tpu.matmul %0, %1, %cst {dimension_numbers = #tpu.dot_dimension_numbers<[1], [1], [0], [0], [0, 0, 1, 0], [], []>, precision = #tpu.contract_precision<fp32>} : vector<8x32xf32>, vector<64x32xf32>, vector<8x64xf32> -> vector<8x64xf32>
    %cst_3 = arith.constant 0.000000e+00 : f32
    %3 = vector.broadcast %cst_3 : f32 to vector<8x64xf32>
    %4 = arith.maximumf %2, %3 : vector<8x64xf32>
    %c0_4 = arith.constant 0 : index
    %c0_5 = arith.constant 0 : index
    %5 = vector.load %arg3[%c0_4, %c0_5] : memref<128x64xf32, #tpu.memory_space<vmem>>, vector<128x64xf32>
    %cst_6 = arith.constant dense<0.000000e+00> : vector<8x128xf32>
    %6 = tpu.matmul %4, %5, %cst_6 {dimension_numbers = #tpu.dot_dimension_numbers<[1], [1], [0], [0], [0, 0, 1, 0], [], []>, precision = #tpu.contract_precision<fp32>} : vector<8x64xf32>, vector<128x64xf32>, vector<8x128xf32> -> vector<8x128xf32>
    %cst_7 = arith.constant 0.000000e+00 : f32
    %7 = vector.broadcast %cst_7 : f32 to vector<8x128xf32>
    %8 = arith.maximumf %6, %7 : vector<8x128xf32>
    %c0_8 = arith.constant 0 : index
    %c0_9 = arith.constant 0 : index
    %9 = vector.load %arg4[%c0_8, %c0_9] : memref<64x128xf32, #tpu.memory_space<vmem>>, vector<64x128xf32>
    %cst_10 = arith.constant dense<0.000000e+00> : vector<8x64xf32>
    %10 = tpu.matmul %8, %9, %cst_10 {dimension_numbers = #tpu.dot_dimension_numbers<[1], [1], [0], [0], [0, 0, 1, 0], [], []>, precision = #tpu.contract_precision<fp32>} : vector<8x128xf32>, vector<64x128xf32>, vector<8x64xf32> -> vector<8x64xf32>
    %cst_11 = arith.constant 0.000000e+00 : f32
    %11 = vector.broadcast %cst_11 : f32 to vector<8x64xf32>
    %12 = arith.maximumf %10, %11 : vector<8x64xf32>
    %c0_12 = arith.constant 0 : index
    %c0_13 = arith.constant 0 : index
    %13 = vector.load %arg5[%c0_12, %c0_13] : memref<16x64xf32, #tpu.memory_space<vmem>>, vector<16x64xf32>
    %cst_14 = arith.constant dense<0.000000e+00> : vector<8x16xf32>
    %14 = tpu.matmul %12, %13, %cst_14 {dimension_numbers = #tpu.dot_dimension_numbers<[1], [1], [0], [0], [0, 0, 1, 0], [], []>, precision = #tpu.contract_precision<fp32>} : vector<8x64xf32>, vector<16x64xf32>, vector<8x16xf32> -> vector<8x16xf32>
    %c0_15 = arith.constant 0 : index
    %c0_16 = arith.constant 0 : index
    %15 = vector.load %arg6[%c0_15, %c0_16] : memref<8x16xf32, #tpu.memory_space<vmem>>, vector<8x16xf32>
    tpu.vector_store %arg6[%c0_15, %c0_16], %14 {strides = array<i32>} : memref<8x16xf32, #tpu.memory_space<vmem>>, vector<8x16xf32>,
    return
  }
  func.func @transform_0(%arg0: i32) -> (i32, i32) {
    %c0_i32 = arith.constant 0 : i32
    %c0_i32_0 = arith.constant 0 : i32
    return %arg0, %c0_i32 : i32, i32
  }
  func.func @transform_1(%arg0: i32) -> (i32, i32) {
    %c0_i32 = arith.constant 0 : i32
    %c0_i32_0 = arith.constant 0 : i32
    %c0_i32_1 = arith.constant 0 : i32
    return %c0_i32, %c0_i32_0 : i32, i32
  }
  func.func @transform_2(%arg0: i32) -> (i32, i32) {
    %c0_i32 = arith.constant 0 : i32
    %c0_i32_0 = arith.constant 0 : i32
    %c0_i32_1 = arith.constant 0 : i32
    return %c0_i32, %c0_i32_0 : i32, i32
  }
  func.func @transform_3(%arg0: i32) -> (i32, i32) {
    %c0_i32 = arith.constant 0 : i32
    %c0_i32_0 = arith.constant 0 : i32
    %c0_i32_1 = arith.constant 0 : i32
    return %c0_i32, %c0_i32_0 : i32, i32
  }
  func.func @transform_4(%arg0: i32) -> (i32, i32) {
    %c0_i32 = arith.constant 0 : i32
    %c0_i32_0 = arith.constant 0 : i32
    %c0_i32_1 = arith.constant 0 : i32
    return %c0_i32, %c0_i32_0 : i32, i32
  }
  func.func @transform_5(%arg0: i32) -> (i32, i32) {
    %c0_i32 = arith.constant 0 : i32
    %c0_i32_0 = arith.constant 0 : i32
    return %arg0, %c0_i32 : i32, i32
  }
}

</mosaic_0001>

<llo_original>
// kernel: tpu_custom_call.1
$region0: #{tpu_custom_call.1}
  #allocation0 [shape = 'u32[]', space=smem, size = 0x4, offset = 0x4, fixed_abs, tag = 'smem constant byte address 0x4 - core index']
  #allocation1 [shape = 'u32[72,128]{1,0:T(1,128)}', space=vmem, size = 0x9000, scoped, tag = 'internal scratch']
  %s0 = inlined_call_operand.vmem [shape: f32[8,32], index: 0, kind: input, shape index: {}]
  %s1 = inlined_call_operand.vmem [shape: f32[64,32], index: 1, kind: input, shape index: {}]
  %s2 = inlined_call_operand.vmem [shape: f32[128,64], index: 2, kind: input, shape index: {}]
  %s3 = inlined_call_operand.vmem [shape: f32[64,128], index: 3, kind: input, shape index: {}]
  %s4 = inlined_call_operand.vmem [shape: f32[16,64], index: 4, kind: input, shape index: {}]
  %s5 = inlined_call_operand.hbm [shape: f32[8,16], index: 5, kind: output, shape index: {}]
  %s6 = sld [smem:[#allocation0]]
  $region30: #{tpu_custom_call.1} parent=0
    _
  %s8 = ssub.s32 1, %s6
  %s9 = scalar_select 0, %s8, %s6
  $region1: #{tpu_custom_call.1} parent=0
    #allocation2 [shape = 'u8[4096]{0}', space=vmem, size = 0x1000, scoped, tag = 'output window, operand 0, single buffered']
    #allocation3 [shape = 's32[1]{0}', space=sflag, size = 0x4, scoped, tag = 'scoped memory for tpu_custom_call.1']
    %10 = vsyncpa [#allocation3], 0
    // Predicated region
    $region2: #{tpu_custom_call.1} parent=1 // pred_check
      _
    $region3: #{tpu_custom_call.1} parent=1 // pred_check_branch
      %12 = sbr.rel (0) target = $region5
    $region4: #{tpu_custom_call.1} parent=1 // pred_region
      _
    $region5: #{tpu_custom_call.1} parent=1 // pred_fallthru
      _
    // Predicated region
    $region6: #{tpu_custom_call.1} parent=1 // pred_check
      _
    $region7: #{tpu_custom_call.1} parent=1 // pred_check_branch
      %14 = sbr.rel (0) target = $region9
    $region8: #{tpu_custom_call.1} parent=1 // pred_region
      _
    $region9: #{tpu_custom_call.1} parent=1 // pred_fallthru
      _
    // Predicated region
    $region10: #{tpu_custom_call.1} parent=1 // pred_check
      _
    $region11: #{tpu_custom_call.1} parent=1 // pred_check_branch
      %16 = sbr.rel (0) target = $region13
    $region12: #{tpu_custom_call.1} parent=1 // pred_region
      _
    $region13: #{tpu_custom_call.1} parent=1 // pred_fallthru
      _
    // Predicated region
    $region14: #{tpu_custom_call.1} parent=1 // pred_check
      _
    $region15: #{tpu_custom_call.1} parent=1 // pred_check_branch
      %18 = sbr.rel (0) target = $region17
    $region16: #{tpu_custom_call.1} parent=1 // pred_region
      _
    $region17: #{tpu_custom_call.1} parent=1 // pred_fallthru
      _
    // Predicated region
    $region18: #{tpu_custom_call.1} parent=1 // pred_check
      _
    $region19: #{tpu_custom_call.1} parent=1 // pred_check_branch
      %20 = sbr.rel (0) target = $region21
    $region20: #{tpu_custom_call.1} parent=1 // pred_region
      _
    $region21: #{tpu_custom_call.1} parent=1 // pred_fallthru
      _
    %v21 = vld [vmem:[%s0] sm:$0xff]
    %v22 = vld [vmem:[%s1] sm:$0xff]
    %v23 = vld [vmem:[%s1 + $0x8] sm:$0xff]
    %v24 = vld [vmem:[%s1 + $0x10] sm:$0xff]
    %v25 = vld [vmem:[%s1 + $0x18] sm:$0xff]
    %v26 = vld [vmem:[%s1 + $0x20] sm:$0xff]
    %v27 = vld [vmem:[%s1 + $0x28] sm:$0xff]
    %v28 = vld [vmem:[%s1 + $0x30] sm:$0xff]
    %v29 = vld [vmem:[%s1 + $0x38] sm:$0xff]
    %vm30 = vcmask 261120
    %v32 = vsel %vm30, %v21, 0
    %v35 = vsel %vm30, %v22, 0
    %v38 = vsel %vm30, %v23, 0
    %v41 = vsel %vm30, %v24, 0
    %v44 = vsel %vm30, %v25, 0
    %v47 = vsel %vm30, %v26, 0
    %v50 = vsel %vm30, %v27, 0
    %v53 = vsel %vm30, %v28, 0
    %v56 = vsel %vm30, %v29, 0
    %58 = vmatpush.xpose.msra.mxu0 0.0
    %59 = vmatpush.xpose.msra.mxu0 0.0
    %60 = vmatpush.xpose.msra.mxu0 0.0
    %61 = vmatpush.xpose.msra.mxu0 0.0
    %62 = vmatpush.xpose.msra.mxu0 0.0
    %63 = vmatpush.xpose.msra.mxu0 0.0
    %64 = vmatpush.xpose.msra.mxu0 0.0
    %65 = vmatpush.xpose.msra.mxu0 0.0
    %v66 = vand.u32 %v56, 4294901760
    %67 = vmatpush.xpose.msra.mxu0 %v66
    %v68 = vand.u32 %v53, 4294901760
    %69 = vmatpush.xpose.msra.mxu0 %v68
    %v70 = vand.u32 %v50, 4294901760
    %71 = vmatpush.xpose.msra.mxu0 %v70
    %v72 = vand.u32 %v47, 4294901760
    %73 = vmatpush.xpose.msra.mxu0 %v72
    %v74 = vand.u32 %v44, 4294901760
    %75 = vmatpush.xpose.msra.mxu0 %v74
    %v76 = vand.u32 %v41, 4294901760
    %77 = vmatpush.xpose.msra.mxu0 %v76
    %v78 = vand.u32 %v38, 4294901760
    %79 = vmatpush.xpose.msra.mxu0 %v78
    %v80 = vand.u32 %v35, 4294901760
    %81 = vmatpush.xpose.msra.mxu0 %v80
    %v82 = vand.u32 %v32, 4294901760
    %v83 = vsub.f32 %v32, %v82
    %v84 = vand.u32 %v83, 4294901760
    %v85 = vsub.f32 %v83, %v84
    %v86 = vand.u32 %v85, 4294901760
    %87 = vmatmul.f32.gmra.mxu0 %v86
    %v88 = vpop.f32.mrf.mxu0
    %v89 = vadd.f32 0.0, %v88
    %90 = vdwg.mxu0
    %91 = vmatpush.xpose.msra.mxu0 0.0
    %92 = vmatpush.xpose.msra.mxu0 0.0
    %93 = vmatpush.xpose.msra.mxu0 0.0
    %94 = vmatpush.xpose.msra.mxu0 0.0
    %95 = vmatpush.xpose.msra.mxu0 0.0
    %96 = vmatpush.xpose.msra.mxu0 0.0
    %97 = vmatpush.xpose.msra.mxu0 0.0
    %98 = vmatpush.xpose.msra.mxu0 0.0
    %v99 = vand.u32 %v56, 4294901760
    %v100 = vsub.f32 %v56, %v99
    %v101 = vand.u32 %v100, 4294901760
    %v102 = vsub.f32 %v100, %v101
    %v103 = vand.u32 %v102, 4294901760
    %104 = vmatpush.xpose.msra.mxu0 %v103
    %v105 = vand.u32 %v53, 4294901760
    %v106 = vsub.f32 %v53, %v105
    %v107 = vand.u32 %v106, 4294901760
    %v108 = vsub.f32 %v106, %v107
    %v109 = vand.u32 %v108, 4294901760
    %110 = vmatpush.xpose.msra.mxu0 %v109
    %v111 = vand.u32 %v50, 4294901760
    %v112 = vsub.f32 %v50, %v111
    %v113 = vand.u32 %v112, 4294901760
    %v114 = vsub.f32 %v112, %v113
    %v115 = vand.u32 %v114, 4294901760
    %116 = vmatpush.xpose.msra.mxu0 %v115
    %v117 = vand.u32 %v47, 4294901760
    %v118 = vsub.f32 %v47, %v117
    %v119 = vand.u32 %v118, 4294901760
    %v120 = vsub.f32 %v118, %v119
    %v121 = vand.u32 %v120, 4294901760
    %122 = vmatpush.xpose.msra.mxu0 %v121
    %v123 = vand.u32 %v44, 4294901760
    %v124 = vsub.f32 %v44, %v123
    %v125 = vand.u32 %v124, 4294901760
    %v126 = vsub.f32 %v124, %v125
    %v127 = vand.u32 %v126, 4294901760
    %128 = vmatpush.xpose.msra.mxu0 %v127
    %v129 = vand.u32 %v41, 4294901760
    %v130 = vsub.f32 %v41, %v129
    %v131 = vand.u32 %v130, 4294901760
    %v132 = vsub.f32 %v130, %v131
    %v133 = vand.u32 %v132, 4294901760
    %134 = vmatpush.xpose.msra.mxu0 %v133
    %v135 = vand.u32 %v38, 4294901760
    %v136 = vsub.f32 %v38, %v135
    %v137 = vand.u32 %v136, 4294901760
    %v138 = vsub.f32 %v136, %v137
    %v139 = vand.u32 %v138, 4294901760
    %140 = vmatpush.xpose.msra.mxu0 %v139
    %v141 = vand.u32 %v35, 4294901760
    %v142 = vsub.f32 %v35, %v141
    %v143 = vand.u32 %v142, 4294901760
    %v144 = vsub.f32 %v142, %v143
    %v145 = vand.u32 %v144, 4294901760
    %146 = vmatpush.xpose.msra.mxu0 %v145
    %v147 = vand.u32 %v32, 4294901760
    %148 = vmatmul.f32.gmra.mxu0 %v147
    %v149 = vpop.f32.mrf.mxu0
    %v150 = vadd.f32 %v89, %v149
    %151 = vdwg.mxu0
    %152 = vmatpush.xpose.msra.mxu0 0.0
    %153 = vmatpush.xpose.msra.mxu0 0.0
    %154 = vmatpush.xpose.msra.mxu0 0.0
    %155 = vmatpush.xpose.msra.mxu0 0.0
    %156 = vmatpush.xpose.msra.mxu0 0.0
    %157 = vmatpush.xpose.msra.mxu0 0.0
    %158 = vmatpush.xpose.msra.mxu0 0.0
    %159 = vmatpush.xpose.msra.mxu0 0.0
    %v160 = vand.u32 %v56, 4294901760
    %v161 = vsub.f32 %v56, %v160
    %162 = vmatpush.xpose.msra.mxu0 %v161
    %v163 = vand.u32 %v53, 4294901760
    %v164 = vsub.f32 %v53, %v163
    %165 = vmatpush.xpose.msra.mxu0 %v164
    %v166 = vand.u32 %v50, 4294901760
    %v167 = vsub.f32 %v50, %v166
    %168 = vmatpush.xpose.msra.mxu0 %v167
    %v169 = vand.u32 %v47, 4294901760
    %v170 = vsub.f32 %v47, %v169
    %171 = vmatpush.xpose.msra.mxu0 %v170
    %v172 = vand.u32 %v44, 4294901760
    %v173 = vsub.f32 %v44, %v172
    %174 = vmatpush.xpose.msra.mxu0 %v173
    %v175 = vand.u32 %v41, 4294901760
    %v176 = vsub.f32 %v41, %v175
    %177 = vmatpush.xpose.msra.mxu0 %v176
    %v178 = vand.u32 %v38, 4294901760
    %v179 = vsub.f32 %v38, %v178
    %180 = vmatpush.xpose.msra.mxu0 %v179
    %v181 = vand.u32 %v35, 4294901760
    %v182 = vsub.f32 %v35, %v181
    %183 = vmatpush.xpose.msra.mxu0 %v182
    %v184 = vand.u32 %v32, 4294901760
    %v185 = vsub.f32 %v32, %v184
    %186 = vmatmul.f32.gmra.mxu0 %v185
    %v187 = vpop.f32.mrf.mxu0
    %v188 = vadd.f32 %v150, %v187
    %189 = vdwg.mxu0
    %190 = vmatpush.xpose.msra.mxu0 0.0
    %191 = vmatpush.xpose.msra.mxu0 0.0
    %192 = vmatpush.xpose.msra.mxu0 0.0
    %193 = vmatpush.xpose.msra.mxu0 0.0
    %194 = vmatpush.xpose.msra.mxu0 0.0
    %195 = vmatpush.xpose.msra.mxu0 0.0
    %196 = vmatpush.xpose.msra.mxu0 0.0
    %197 = vmatpush.xpose.msra.mxu0 0.0
    %v198 = vand.u32 %v56, 4294901760
    %199 = vmatpush.xpose.msra.mxu0 %v198
    %v200 = vand.u32 %v53, 4294901760
    %201 = vmatpush.xpose.msra.mxu0 %v200
    %v202 = vand.u32 %v50, 4294901760
    %203 = vmatpush.xpose.msra.mxu0 %v202
    %v204 = vand.u32 %v47, 4294901760
    %205 = vmatpush.xpose.msra.mxu0 %v204
    %v206 = vand.u32 %v44, 4294901760
    %207 = vmatpush.xpose.msra.mxu0 %v206
    %v208 = vand.u32 %v41, 4294901760
    %209 = vmatpush.xpose.msra.mxu0 %v208
    %v210 = vand.u32 %v38, 4294901760
    %211 = vmatpush.xpose.msra.mxu0 %v210
    %v212 = vand.u32 %v35, 4294901760
    %213 = vmatpush.xpose.msra.mxu0 %v212
    %v214 = vand.u32 %v32, 4294901760
    %v215 = vsub.f32 %v32, %v214
    %v216 = vand.u32 %v215, 4294901760
    %217 = vmatmul.f32.gmra.mxu0 %v216
    %v218 = vpop.f32.mrf.mxu0
    %v219 = vadd.f32 %v188, %v218
    %220 = vdwg.mxu0
    %221 = vmatpush.xpose.msra.mxu0 0.0
    %222 = vmatpush.xpose.msra.mxu0 0.0
    %223 = vmatpush.xpose.msra.mxu0 0.0
    %224 = vmatpush.xpose.msra.mxu0 0.0
    %225 = vmatpush.xpose.msra.mxu0 0.0
    %226 = vmatpush.xpose.msra.mxu0 0.0
    %227 = vmatpush.xpose.msra.mxu0 0.0
    %228 = vmatpush.xpose.msra.mxu0 0.0
    %v229 = vand.u32 %v56, 4294901760
    %v230 = vsub.f32 %v56, %v229
    %v231 = vand.u32 %v230, 4294901760
    %232 = vmatpush.xpose.msra.mxu0 %v231
    %v233 = vand.u32 %v53, 4294901760
    %v234 = vsub.f32 %v53, %v233
    %v235 = vand.u32 %v234, 4294901760
    %236 = vmatpush.xpose.msra.mxu0 %v235
    %v237 = vand.u32 %v50, 4294901760
    %v238 = vsub.f32 %v50, %v237
    %v239 = vand.u32 %v238, 4294901760
    %240 = vmatpush.xpose.msra.mxu0 %v239
    %v241 = vand.u32 %v47, 4294901760
    %v242 = vsub.f32 %v47, %v241
    %v243 = vand.u32 %v242, 4294901760
    %244 = vmatpush.xpose.msra.mxu0 %v243
    %v245 = vand.u32 %v44, 4294901760
    %v246 = vsub.f32 %v44, %v245
    %v247 = vand.u32 %v246, 4294901760
    %248 = vmatpush.xpose.msra.mxu0 %v247
    %v249 = vand.u32 %v41, 4294901760
    %v250 = vsub.f32 %v41, %v249
    %v251 = vand.u32 %v250, 4294901760
    %252 = vmatpush.xpose.msra.mxu0 %v251
    %v253 = vand.u32 %v38, 4294901760
    %v254 = vsub.f32 %v38, %v253
    %v255 = vand.u32 %v254, 4294901760
    %256 = vmatpush.xpose.msra.mxu0 %v255
    %v257 = vand.u32 %v35, 4294901760
    %v258 = vsub.f32 %v35, %v257
    %v259 = vand.u32 %v258, 4294901760
    %260 = vmatpush.xpose.msra.mxu0 %v259
    %v261 = vand.u32 %v32, 4294901760
    %262 = vmatmul.f32.gmra.mxu0 %v261
    %v263 = vpop.f32.mrf.mxu0
    %v264 = vadd.f32 %v219, %v263
    %265 = vdwg.mxu0
    %266 = vmatpush.xpose.msra.mxu0 0.0
    %267 = vmatpush.xpose.msra.mxu0 0.0
    %268 = vmatpush.xpose.msra.mxu0 0.0
    %269 = vmatpush.xpose.msra.mxu0 0.0
    %270 = vmatpush.xpose.msra.mxu0 0.0
    %271 = vmatpush.xpose.msra.mxu0 0.0
    %272 = vmatpush.xpose.msra.mxu0 0.0
    %273 = vmatpush.xpose.msra.mxu0 0.0
    %v274 = vand.u32 %v56, 4294901760
    %275 = vmatpush.xpose.msra.mxu0 %v274
    %v276 = vand.u32 %v53, 4294901760
    %277 = vmatpush.xpose.msra.mxu0 %v276
    %v278 = vand.u32 %v50, 4294901760
    %279 = vmatpush.xpose.msra.mxu0 %v278
    %v280 = vand.u32 %v47, 4294901760
    %281 = vmatpush.xpose.msra.mxu0 %v280
    %v282 = vand.u32 %v44, 4294901760
    %283 = vmatpush.xpose.msra.mxu0 %v282
    %v284 = vand.u32 %v41, 4294901760
    %285 = vmatpush.xpose.msra.mxu0 %v284
    %v286 = vand.u32 %v38, 4294901760
    %287 = vmatpush.xpose.msra.mxu0 %v286
    %v288 = vand.u32 %v35, 4294901760
    %289 = vmatpush.xpose.msra.mxu0 %v288
    %v290 = vand.u32 %v32, 4294901760
    %291 = vmatmul.f32.gmra.mxu0 %v290
    %v292 = vpop.f32.mrf.mxu0
    %v293 = vadd.f32 %v264, %v292
    %294 = vdwg.mxu0
    %v295 = vmax.f32 %v293, 0.0
    %v296 = vld [vmem:[%s2] sm:$0xff]
    %v297 = vld [vmem:[%s2 + $0x8] sm:$0xff]
    %v298 = vld [vmem:[%s2 + $0x10] sm:$0xff]
    %v299 = vld [vmem:[%s2 + $0x18] sm:$0xff]
    %v300 = vld [vmem:[%s2 + $0x20] sm:$0xff]
    %v301 = vld [vmem:[%s2 + $0x28] sm:$0xff]
    %v302 = vld [vmem:[%s2 + $0x30] sm:$0xff]
    %v303 = vld [vmem:[%s2 + $0x38] sm:$0xff]
    %v304 = vld [vmem:[%s2 + $0x40] sm:$0xff]
    %v305 = vld [vmem:[%s2 + $0x48] sm:$0xff]
    %v306 = vld [vmem:[%s2 + $0x50] sm:$0xff]
    %v307 = vld [vmem:[%s2 + $0x58] sm:$0xff]
    %v308 = vld [vmem:[%s2 + $0x60] sm:$0xff]
    %v309 = vld [vmem:[%s2 + $0x68] sm:$0xff]
    %v310 = vld [vmem:[%s2 + $0x70] sm:$0xff]
    %v311 = vld [vmem:[%s2 + $0x78] sm:$0xff]
    %vm312 = vcmask 523264
    %v314 = vsel %vm312, %v295, 0
    %v317 = vsel %vm312, %v296, 0
    %v320 = vsel %vm312, %v297, 0
    %v323 = vsel %vm312, %v298, 0
    %v326 = vsel %vm312, %v299, 0
    %v329 = vsel %vm312, %v300, 0
    %v332 = vsel %vm312, %v301, 0
    %v335 = vsel %vm312, %v302, 0
    %v338 = vsel %vm312, %v303, 0
    %v341 = vsel %vm312, %v304, 0
    %v344 = vsel %vm312, %v305, 0
    %v347 = vsel %vm312, %v306, 0
    %v350 = vsel %vm312, %v307, 0
    %v353 = vsel %vm312, %v308, 0
    %v356 = vsel %vm312, %v309, 0
    %v359 = vsel %vm312, %v310, 0
    %v362 = vsel %vm312, %v311, 0
    %v364 = vand.u32 %v362, 4294901760
    %365 = vmatpush.xpose.msra.mxu0 %v364
    %v366 = vand.u32 %v359, 4294901760
    %367 = vmatpush.xpose.msra.mxu0 %v366
    %v368 = vand.u32 %v356, 4294901760
    %369 = vmatpush.xpose.msra.mxu0 %v368
    %v370 = vand.u32 %v353, 4294901760
    %371 = vmatpush.xpose.msra.mxu0 %v370
    %v372 = vand.u32 %v350, 4294901760
    %373 = vmatpush.xpose.msra.mxu0 %v372
    %v374 = vand.u32 %v347, 4294901760
    %375 = vmatpush.xpose.msra.mxu0 %v374
    %v376 = vand.u32 %v344, 4294901760
    %377 = vmatpush.xpose.msra.mxu0 %v376
    %v378 = vand.u32 %v341, 4294901760
    %379 = vmatpush.xpose.msra.mxu0 %v378
    %v380 = vand.u32 %v338, 4294901760
    %381 = vmatpush.xpose.msra.mxu0 %v380
    %v382 = vand.u32 %v335, 4294901760
    %383 = vmatpush.xpose.msra.mxu0 %v382
    %v384 = vand.u32 %v332, 4294901760
    %385 = vmatpush.xpose.msra.mxu0 %v384
    %v386 = vand.u32 %v329, 4294901760
    %387 = vmatpush.xpose.msra.mxu0 %v386
    %v388 = vand.u32 %v326, 4294901760
    %389 = vmatpush.xpose.msra.mxu0 %v388
    %v390 = vand.u32 %v323, 4294901760
    %391 = vmatpush.xpose.msra.mxu0 %v390
    %v392 = vand.u32 %v320, 4294901760
    %393 = vmatpush.xpose.msra.mxu0 %v392
    %v394 = vand.u32 %v317, 4294901760
    %395 = vmatpush.xpose.msra.mxu0 %v394
    %v396 = vand.u32 %v314, 4294901760
    %v397 = vsub.f32 %v314, %v396
    %v398 = vand.u32 %v397, 4294901760
    %v399 = vsub.f32 %v397, %v398
    %v400 = vand.u32 %v399, 4294901760
    %401 = vmatmul.f32.gmra.mxu0 %v400
    %v402 = vpop.f32.mrf.mxu0
    %v403 = vadd.f32 0.0, %v402
    %404 = vdwg.mxu0
    %v405 = vand.u32 %v362, 4294901760
    %v406 = vsub.f32 %v362, %v405
    %v407 = vand.u32 %v406, 4294901760
    %v408 = vsub.f32 %v406, %v407
    %v409 = vand.u32 %v408, 4294901760
    %410 = vmatpush.xpose.msra.mxu0 %v409
    %v411 = vand.u32 %v359, 4294901760
    %v412 = vsub.f32 %v359, %v411
    %v413 = vand.u32 %v412, 4294901760
    %v414 = vsub.f32 %v412, %v413
    %v415 = vand.u32 %v414, 4294901760
    %416 = vmatpush.xpose.msra.mxu0 %v415
    %v417 = vand.u32 %v356, 4294901760
    %v418 = vsub.f32 %v356, %v417
    %v419 = vand.u32 %v418, 4294901760
    %v420 = vsub.f32 %v418, %v419
    %v421 = vand.u32 %v420, 4294901760
    %422 = vmatpush.xpose.msra.mxu0 %v421
    %v423 = vand.u32 %v353, 4294901760
    %v424 = vsub.f32 %v353, %v423
    %v425 = vand.u32 %v424, 4294901760
    %v426 = vsub.f32 %v424, %v425
    %v427 = vand.u32 %v426, 4294901760
    %428 = vmatpush.xpose.msra.mxu0 %v427
    %v429 = vand.u32 %v350, 4294901760
    %v430 = vsub.f32 %v350, %v429
    %v431 = vand.u32 %v430, 4294901760
    %v432 = vsub.f32 %v430, %v431
    %v433 = vand.u32 %v432, 4294901760
    %434 = vmatpush.xpose.msra.mxu0 %v433
    %v435 = vand.u32 %v347, 4294901760
    %v436 = vsub.f32 %v347, %v435
    %v437 = vand.u32 %v436, 4294901760
    %v438 = vsub.f32 %v436, %v437
    %v439 = vand.u32 %v438, 4294901760
    %440 = vmatpush.xpose.msra.mxu0 %v439
    %v441 = vand.u32 %v344, 4294901760
    %v442 = vsub.f32 %v344, %v441
    %v443 = vand.u32 %v442, 4294901760
    %v444 = vsub.f32 %v442, %v443
    %v445 = vand.u32 %v444, 4294901760
    %446 = vmatpush.xpose.msra.mxu0 %v445
    %v447 = vand.u32 %v341, 4294901760
    %v448 = vsub.f32 %v341, %v447
    %v449 = vand.u32 %v448, 4294901760
    %v450 = vsub.f32 %v448, %v449
    %v451 = vand.u32 %v450, 4294901760
    %452 = vmatpush.xpose.msra.mxu0 %v451
    %v453 = vand.u32 %v338, 4294901760
    %v454 = vsub.f32 %v338, %v453
    %v455 = vand.u32 %v454, 4294901760
    %v456 = vsub.f32 %v454, %v455
    %v457 = vand.u32 %v456, 4294901760
    %458 = vmatpush.xpose.msra.mxu0 %v457
    %v459 = vand.u32 %v335, 4294901760
    %v460 = vsub.f32 %v335, %v459
    %v461 = vand.u32 %v460, 4294901760
    %v462 = vsub.f32 %v460, %v461
    %v463 = vand.u32 %v462, 4294901760
    %464 = vmatpush.xpose.msra.mxu0 %v463
    %v465 = vand.u32 %v332, 4294901760
    %v466 = vsub.f32 %v332, %v465
    %v467 = vand.u32 %v466, 4294901760
    %v468 = vsub.f32 %v466, %v467
    %v469 = vand.u32 %v468, 4294901760
    %470 = vmatpush.xpose.msra.mxu0 %v469
    %v471 = vand.u32 %v329, 4294901760
    %v472 = vsub.f32 %v329, %v471
    %v473 = vand.u32 %v472, 4294901760
    %v474 = vsub.f32 %v472, %v473
    %v475 = vand.u32 %v474, 4294901760
    %476 = vmatpush.xpose.msra.mxu0 %v475
    %v477 = vand.u32 %v326, 4294901760
    %v478 = vsub.f32 %v326, %v477
    %v479 = vand.u32 %v478, 4294901760
    %v480 = vsub.f32 %v478, %v479
    %v481 = vand.u32 %v480, 4294901760
    %482 = vmatpush.xpose.msra.mxu0 %v481
    %v483 = vand.u32 %v323, 4294901760
    %v484 = vsub.f32 %v323, %v483
    %v485 = vand.u32 %v484, 4294901760
    %v486 = vsub.f32 %v484, %v485
    %v487 = vand.u32 %v486, 4294901760
    %488 = vmatpush.xpose.msra.mxu0 %v487
    %v489 = vand.u32 %v320, 4294901760
    %v490 = vsub.f32 %v320, %v489
    %v491 = vand.u32 %v490, 4294901760
    %v492 = vsub.f32 %v490, %v491
    %v493 = vand.u32 %v492, 4294901760
    %494 = vmatpush.xpose.msra.mxu0 %v493
    %v495 = vand.u32 %v317, 4294901760
    %v496 = vsub.f32 %v317, %v495
    %v497 = vand.u32 %v496, 4294901760
    %v498 = vsub.f32 %v496, %v497
    %v499 = vand.u32 %v498, 4294901760
    %500 = vmatpush.xpose.msra.mxu0 %v499
    %v501 = vand.u32 %v314, 4294901760
    %502 = vmatmul.f32.gmra.mxu0 %v501
    %v503 = vpop.f32.mrf.mxu0
    %v504 = vadd.f32 %v403, %v503
    %505 = vdwg.mxu0
    %v506 = vand.u32 %v362, 4294901760
    %v507 = vsub.f32 %v362, %v506
    %508 = vmatpush.xpose.msra.mxu0 %v507
    %v509 = vand.u32 %v359, 4294901760
    %v510 = vsub.f32 %v359, %v509
    %511 = vmatpush.xpose.msra.mxu0 %v510
    %v512 = vand.u32 %v356, 4294901760
    %v513 = vsub.f32 %v356, %v512
    %514 = vmatpush.xpose.msra.mxu0 %v513
    %v515 = vand.u32 %v353, 4294901760
    %v516 = vsub.f32 %v353, %v515
    %517 = vmatpush.xpose.msra.mxu0 %v516
    %v518 = vand.u32 %v350, 4294901760
    %v519 = vsub.f32 %v350, %v518
    %520 = vmatpush.xpose.msra.mxu0 %v519
    %v521 = vand.u32 %v347, 4294901760
    %v522 = vsub.f32 %v347, %v521
    %523 = vmatpush.xpose.msra.mxu0 %v522
    %v524 = vand.u32 %v344, 4294901760
    %v525 = vsub.f32 %v344, %v524
    %526 = vmatpush.xpose.msra.mxu0 %v525
    %v527 = vand.u32 %v341, 4294901760
    %v528 = vsub.f32 %v341, %v527
    %529 = vmatpush.xpose.msra.mxu0 %v528
    %v530 = vand.u32 %v338, 4294901760
    %v531 = vsub.f32 %v338, %v530
    %532 = vmatpush.xpose.msra.mxu0 %v531
    %v533 = vand.u32 %v335, 4294901760
    %v534 = vsub.f32 %v335, %v533
    %535 = vmatpush.xpose.msra.mxu0 %v534
    %v536 = vand.u32 %v332, 4294901760
    %v537 = vsub.f32 %v332, %v536
    %538 = vmatpush.xpose.msra.mxu0 %v537
    %v539 = vand.u32 %v329, 4294901760
    %v540 = vsub.f32 %v329, %v539
    %541 = vmatpush.xpose.msra.mxu0 %v540
    %v542 = vand.u32 %v326, 4294901760
    %v543 = vsub.f32 %v326, %v542
    %544 = vmatpush.xpose.msra.mxu0 %v543
    %v545 = vand.u32 %v323, 4294901760
    %v546 = vsub.f32 %v323, %v545
    %547 = vmatpush.xpose.msra.mxu0 %v546
    %v548 = vand.u32 %v320, 4294901760
    %v549 = vsub.f32 %v320, %v548
    %550 = vmatpush.xpose.msra.mxu0 %v549
    %v551 = vand.u32 %v317, 4294901760
    %v552 = vsub.f32 %v317, %v551
    %553 = vmatpush.xpose.msra.mxu0 %v552
    %v554 = vand.u32 %v314, 4294901760
    %v555 = vsub.f32 %v314, %v554
    %556 = vmatmul.f32.gmra.mxu0 %v555
    %v557 = vpop.f32.mrf.mxu0
    %v558 = vadd.f32 %v504, %v557
    %559 = vdwg.mxu0
    %v560 = vand.u32 %v362, 4294901760
    %561 = vmatpush.xpose.msra.mxu0 %v560
    %v562 = vand.u32 %v359, 4294901760
    %563 = vmatpush.xpose.msra.mxu0 %v562
    %v564 = vand.u32 %v356, 4294901760
    %565 = vmatpush.xpose.msra.mxu0 %v564
    %v566 = vand.u32 %v353, 4294901760
    %567 = vmatpush.xpose.msra.mxu0 %v566
    %v568 = vand.u32 %v350, 4294901760
    %569 = vmatpush.xpose.msra.mxu0 %v568
    %v570 = vand.u32 %v347, 4294901760
    %571 = vmatpush.xpose.msra.mxu0 %v570
    %v572 = vand.u32 %v344, 4294901760
    %573 = vmatpush.xpose.msra.mxu0 %v572
    %v574 = vand.u32 %v341, 4294901760
    %575 = vmatpush.xpose.msra.mxu0 %v574
    %v576 = vand.u32 %v338, 4294901760
    %577 = vmatpush.xpose.msra.mxu0 %v576
    %v578 = vand.u32 %v335, 4294901760
    %579 = vmatpush.xpose.msra.mxu0 %v578
    %v580 = vand.u32 %v332, 4294901760
    %581 = vmatpush.xpose.msra.mxu0 %v580
    %v582 = vand.u32 %v329, 4294901760
    %583 = vmatpush.xpose.msra.mxu0 %v582
    %v584 = vand.u32 %v326, 4294901760
    %585 = vmatpush.xpose.msra.mxu0 %v584
    %v586 = vand.u32 %v323, 4294901760
    %587 = vmatpush.xpose.msra.mxu0 %v586
    %v588 = vand.u32 %v320, 4294901760
    %589 = vmatpush.xpose.msra.mxu0 %v588
    %v590 = vand.u32 %v317, 4294901760
    %591 = vmatpush.xpose.msra.mxu0 %v590
    %v592 = vand.u32 %v314, 4294901760
    %v593 = vsub.f32 %v314, %v592
    %v594 = vand.u32 %v593, 4294901760
    %595 = vmatmul.f32.gmra.mxu0 %v594
    %v596 = vpop.f32.mrf.mxu0
    %v597 = vadd.f32 %v558, %v596
    %598 = vdwg.mxu0
    %v599 = vand.u32 %v362, 4294901760
    %v600 = vsub.f32 %v362, %v599
    %v601 = vand.u32 %v600, 4294901760
    %602 = vmatpush.xpose.msra.mxu0 %v601
    %v603 = vand.u32 %v359, 4294901760
    %v604 = vsub.f32 %v359, %v603
    %v605 = vand.u32 %v604, 4294901760
    %606 = vmatpush.xpose.msra.mxu0 %v605
    %v607 = vand.u32 %v356, 4294901760
    %v608 = vsub.f32 %v356, %v607
    %v609 = vand.u32 %v608, 4294901760
    %610 = vmatpush.xpose.msra.mxu0 %v609
    %v611 = vand.u32 %v353, 4294901760
    %v612 = vsub.f32 %v353, %v611
    %v613 = vand.u32 %v612, 4294901760
    %614 = vmatpush.xpose.msra.mxu0 %v613
    %v615 = vand.u32 %v350, 4294901760
    %v616 = vsub.f32 %v350, %v615
    %v617 = vand.u32 %v616, 4294901760
    %618 = vmatpush.xpose.msra.mxu0 %v617
    %v619 = vand.u32 %v347, 4294901760
    %v620 = vsub.f32 %v347, %v619
    %v621 = vand.u32 %v620, 4294901760
    %622 = vmatpush.xpose.msra.mxu0 %v621
    %v623 = vand.u32 %v344, 4294901760
    %v624 = vsub.f32 %v344, %v623
    %v625 = vand.u32 %v624, 4294901760
    %626 = vmatpush.xpose.msra.mxu0 %v625
    %v627 = vand.u32 %v341, 4294901760
    %v628 = vsub.f32 %v341, %v627
    %v629 = vand.u32 %v628, 4294901760
    %630 = vmatpush.xpose.msra.mxu0 %v629
    %v631 = vand.u32 %v338, 4294901760
    %v632 = vsub.f32 %v338, %v631
    %v633 = vand.u32 %v632, 4294901760
    %634 = vmatpush.xpose.msra.mxu0 %v633
    %v635 = vand.u32 %v335, 4294901760
    %v636 = vsub.f32 %v335, %v635
    %v637 = vand.u32 %v636, 4294901760
    %638 = vmatpush.xpose.msra.mxu0 %v637
    %v639 = vand.u32 %v332, 4294901760
    %v640 = vsub.f32 %v332, %v639
    %v641 = vand.u32 %v640, 4294901760
    %642 = vmatpush.xpose.msra.mxu0 %v641
    %v643 = vand.u32 %v329, 4294901760
    %v644 = vsub.f32 %v329, %v643
    %v645 = vand.u32 %v644, 4294901760
    %646 = vmatpush.xpose.msra.mxu0 %v645
    %v647 = vand.u32 %v326, 4294901760
    %v648 = vsub.f32 %v326, %v647
    %v649 = vand.u32 %v648, 4294901760
    %650 = vmatpush.xpose.msra.mxu0 %v649
    %v651 = vand.u32 %v323, 4294901760
    %v652 = vsub.f32 %v323, %v651
    %v653 = vand.u32 %v652, 4294901760
    %654 = vmatpush.xpose.msra.mxu0 %v653
    %v655 = vand.u32 %v320, 4294901760
    %v656 = vsub.f32 %v320, %v655
    %v657 = vand.u32 %v656, 4294901760
    %658 = vmatpush.xpose.msra.mxu0 %v657
    %v659 = vand.u32 %v317, 4294901760
    %v660 = vsub.f32 %v317, %v659
    %v661 = vand.u32 %v660, 4294901760
    %662 = vmatpush.xpose.msra.mxu0 %v661
    %v663 = vand.u32 %v314, 4294901760
    %664 = vmatmul.f32.gmra.mxu0 %v663
    %v665 = vpop.f32.mrf.mxu0
    %v666 = vadd.f32 %v597, %v665
    %667 = vdwg.mxu0
    %v668 = vand.u32 %v362, 4294901760
    %669 = vmatpush.xpose.msra.mxu0 %v668
    %v670 = vand.u32 %v359, 4294901760
    %671 = vmatpush.xpose.msra.mxu0 %v670
    %v672 = vand.u32 %v356, 4294901760
    %673 = vmatpush.xpose.msra.mxu0 %v672
    %v674 = vand.u32 %v353, 4294901760
    %675 = vmatpush.xpose.msra.mxu0 %v674
    %v676 = vand.u32 %v350, 4294901760
    %677 = vmatpush.xpose.msra.mxu0 %v676
    %v678 = vand.u32 %v347, 4294901760
    %679 = vmatpush.xpose.msra.mxu0 %v678
    %v680 = vand.u32 %v344, 4294901760
    %681 = vmatpush.xpose.msra.mxu0 %v680
    %v682 = vand.u32 %v341, 4294901760
    %683 = vmatpush.xpose.msra.mxu0 %v682
    %v684 = vand.u32 %v338, 4294901760
    %685 = vmatpush.xpose.msra.mxu0 %v684
    %v686 = vand.u32 %v335, 4294901760
    %687 = vmatpush.xpose.msra.mxu0 %v686
    %v688 = vand.u32 %v332, 4294901760
    %689 = vmatpush.xpose.msra.mxu0 %v688
    %v690 = vand.u32 %v329, 4294901760
    %691 = vmatpush.xpose.msra.mxu0 %v690
    %v692 = vand.u32 %v326, 4294901760
    %693 = vmatpush.xpose.msra.mxu0 %v692
    %v694 = vand.u32 %v323, 4294901760
    %695 = vmatpush.xpose.msra.mxu0 %v694
    %v696 = vand.u32 %v320, 4294901760
    %697 = vmatpush.xpose.msra.mxu0 %v696
    %v698 = vand.u32 %v317, 4294901760
    %699 = vmatpush.xpose.msra.mxu0 %v698
    %v700 = vand.u32 %v314, 4294901760
    %701 = vmatmul.f32.gmra.mxu0 %v700
    %v702 = vpop.f32.mrf.mxu0
    %v703 = vadd.f32 %v666, %v702
    %704 = vdwg.mxu0
    %v705 = vmax.f32 %v703, 0.0
    %v706 = vld [vmem:[%s3] sm:$0xff]
    %v707 = vld [vmem:[%s3 + $0x8] sm:$0xff]
    %v708 = vld [vmem:[%s3 + $0x10] sm:$0xff]
    %v709 = vld [vmem:[%s3 + $0x18] sm:$0xff]
    %v710 = vld [vmem:[%s3 + $0x20] sm:$0xff]
    %v711 = vld [vmem:[%s3 + $0x28] sm:$0xff]
    %v712 = vld [vmem:[%s3 + $0x30] sm:$0xff]
    %v713 = vld [vmem:[%s3 + $0x38] sm:$0xff]
    %714 = vmatpush.xpose.msra.mxu0 0.0
    %715 = vmatpush.xpose.msra.mxu0 0.0
    %716 = vmatpush.xpose.msra.mxu0 0.0
    %717 = vmatpush.xpose.msra.mxu0 0.0
    %718 = vmatpush.xpose.msra.mxu0 0.0
    %719 = vmatpush.xpose.msra.mxu0 0.0
    %720 = vmatpush.xpose.msra.mxu0 0.0
    %721 = vmatpush.xpose.msra.mxu0 0.0
    %v722 = vand.u32 %v713, 4294901760
    %723 = vmatpush.xpose.msra.mxu0 %v722
    %v724 = vand.u32 %v712, 4294901760
    %725 = vmatpush.xpose.msra.mxu0 %v724
    %v726 = vand.u32 %v711, 4294901760
    %727 = vmatpush.xpose.msra.mxu0 %v726
    %v728 = vand.u32 %v710, 4294901760
    %729 = vmatpush.xpose.msra.mxu0 %v728
    %v730 = vand.u32 %v709, 4294901760
    %731 = vmatpush.xpose.msra.mxu0 %v730
    %v732 = vand.u32 %v708, 4294901760
    %733 = vmatpush.xpose.msra.mxu0 %v732
    %v734 = vand.u32 %v707, 4294901760
    %735 = vmatpush.xpose.msra.mxu0 %v734
    %v736 = vand.u32 %v706, 4294901760
    %737 = vmatpush.xpose.msra.mxu0 %v736
    %v738 = vand.u32 %v705, 4294901760
    %v739 = vsub.f32 %v705, %v738
    %v740 = vand.u32 %v739, 4294901760
    %v741 = vsub.f32 %v739, %v740
    %v742 = vand.u32 %v741, 4294901760
    %743 = vmatmul.f32.gmra.mxu0 %v742
    %v744 = vpop.f32.mrf.mxu0
    %v745 = vadd.f32 0.0, %v744
    %746 = vdwg.mxu0
    %747 = vmatpush.xpose.msra.mxu0 0.0
    %748 = vmatpush.xpose.msra.mxu0 0.0
    %749 = vmatpush.xpose.msra.mxu0 0.0
    %750 = vmatpush.xpose.msra.mxu0 0.0
    %751 = vmatpush.xpose.msra.mxu0 0.0
    %752 = vmatpush.xpose.msra.mxu0 0.0
    %753 = vmatpush.xpose.msra.mxu0 0.0
    %754 = vmatpush.xpose.msra.mxu0 0.0
    %v755 = vand.u32 %v713, 4294901760
    %v756 = vsub.f32 %v713, %v755
    %v757 = vand.u32 %v756, 4294901760
    %v758 = vsub.f32 %v756, %v757
    %v759 = vand.u32 %v758, 4294901760
    %760 = vmatpush.xpose.msra.mxu0 %v759
    %v761 = vand.u32 %v712, 4294901760
    %v762 = vsub.f32 %v712, %v761
    %v763 = vand.u32 %v762, 4294901760
    %v764 = vsub.f32 %v762, %v763
    %v765 = vand.u32 %v764, 4294901760
    %766 = vmatpush.xpose.msra.mxu0 %v765
    %v767 = vand.u32 %v711, 4294901760
    %v768 = vsub.f32 %v711, %v767
    %v769 = vand.u32 %v768, 4294901760
    %v770 = vsub.f32 %v768, %v769
    %v771 = vand.u32 %v770, 4294901760
    %772 = vmatpush.xpose.msra.mxu0 %v771
    %v773 = vand.u32 %v710, 4294901760
    %v774 = vsub.f32 %v710, %v773
    %v775 = vand.u32 %v774, 4294901760
    %v776 = vsub.f32 %v774, %v775
    %v777 = vand.u32 %v776, 4294901760
    %778 = vmatpush.xpose.msra.mxu0 %v777
    %v779 = vand.u32 %v709, 4294901760
    %v780 = vsub.f32 %v709, %v779
    %v781 = vand.u32 %v780, 4294901760
    %v782 = vsub.f32 %v780, %v781
    %v783 = vand.u32 %v782, 4294901760
    %784 = vmatpush.xpose.msra.mxu0 %v783
    %v785 = vand.u32 %v708, 4294901760
    %v786 = vsub.f32 %v708, %v785
    %v787 = vand.u32 %v786, 4294901760
    %v788 = vsub.f32 %v786, %v787
    %v789 = vand.u32 %v788, 4294901760
    %790 = vmatpush.xpose.msra.mxu0 %v789
    %v791 = vand.u32 %v707, 4294901760
    %v792 = vsub.f32 %v707, %v791
    %v793 = vand.u32 %v792, 4294901760
    %v794 = vsub.f32 %v792, %v793
    %v795 = vand.u32 %v794, 4294901760
    %796 = vmatpush.xpose.msra.mxu0 %v795
    %v797 = vand.u32 %v706, 4294901760
    %v798 = vsub.f32 %v706, %v797
    %v799 = vand.u32 %v798, 4294901760
    %v800 = vsub.f32 %v798, %v799
    %v801 = vand.u32 %v800, 4294901760
    %802 = vmatpush.xpose.msra.mxu0 %v801
    %v803 = vand.u32 %v705, 4294901760
    %804 = vmatmul.f32.gmra.mxu0 %v803
    %v805 = vpop.f32.mrf.mxu0
    %v806 = vadd.f32 %v745, %v805
    %807 = vdwg.mxu0
    %808 = vmatpush.xpose.msra.mxu0 0.0
    %809 = vmatpush.xpose.msra.mxu0 0.0
    %810 = vmatpush.xpose.msra.mxu0 0.0
    %811 = vmatpush.xpose.msra.mxu0 0.0
    %812 = vmatpush.xpose.msra.mxu0 0.0
    %813 = vmatpush.xpose.msra.mxu0 0.0
    %814 = vmatpush.xpose.msra.mxu0 0.0
    %815 = vmatpush.xpose.msra.mxu0 0.0
    %v816 = vand.u32 %v713, 4294901760
    %v817 = vsub.f32 %v713, %v816
    %818 = vmatpush.xpose.msra.mxu0 %v817
    %v819 = vand.u32 %v712, 4294901760
    %v820 = vsub.f32 %v712, %v819
    %821 = vmatpush.xpose.msra.mxu0 %v820
    %v822 = vand.u32 %v711, 4294901760
    %v823 = vsub.f32 %v711, %v822
    %824 = vmatpush.xpose.msra.mxu0 %v823
    %v825 = vand.u32 %v710, 4294901760
    %v826 = vsub.f32 %v710, %v825
    %827 = vmatpush.xpose.msra.mxu0 %v826
    %v828 = vand.u32 %v709, 4294901760
    %v829 = vsub.f32 %v709, %v828
    %830 = vmatpush.xpose.msra.mxu0 %v829
    %v831 = vand.u32 %v708, 4294901760
    %v832 = vsub.f32 %v708, %v831
    %833 = vmatpush.xpose.msra.mxu0 %v832
    %v834 = vand.u32 %v707, 4294901760
    %v835 = vsub.f32 %v707, %v834
    %836 = vmatpush.xpose.msra.mxu0 %v835
    %v837 = vand.u32 %v706, 4294901760
    %v838 = vsub.f32 %v706, %v837
    %839 = vmatpush.xpose.msra.mxu0 %v838
    %v840 = vand.u32 %v705, 4294901760
    %v841 = vsub.f32 %v705, %v840
    %842 = vmatmul.f32.gmra.mxu0 %v841
    %v843 = vpop.f32.mrf.mxu0
    %v844 = vadd.f32 %v806, %v843
    %845 = vdwg.mxu0
    %846 = vmatpush.xpose.msra.mxu0 0.0
    %847 = vmatpush.xpose.msra.mxu0 0.0
    %848 = vmatpush.xpose.msra.mxu0 0.0
    %849 = vmatpush.xpose.msra.mxu0 0.0
    %850 = vmatpush.xpose.msra.mxu0 0.0
    %851 = vmatpush.xpose.msra.mxu0 0.0
    %852 = vmatpush.xpose.msra.mxu0 0.0
    %853 = vmatpush.xpose.msra.mxu0 0.0
    %v854 = vand.u32 %v713, 4294901760
    %855 = vmatpush.xpose.msra.mxu0 %v854
    %v856 = vand.u32 %v712, 4294901760
    %857 = vmatpush.xpose.msra.mxu0 %v856
    %v858 = vand.u32 %v711, 4294901760
    %859 = vmatpush.xpose.msra.mxu0 %v858
    %v860 = vand.u32 %v710, 4294901760
    %861 = vmatpush.xpose.msra.mxu0 %v860
    %v862 = vand.u32 %v709, 4294901760
    %863 = vmatpush.xpose.msra.mxu0 %v862
    %v864 = vand.u32 %v708, 4294901760
    %865 = vmatpush.xpose.msra.mxu0 %v864
    %v866 = vand.u32 %v707, 4294901760
    %867 = vmatpush.xpose.msra.mxu0 %v866
    %v868 = vand.u32 %v706, 4294901760
    %869 = vmatpush.xpose.msra.mxu0 %v868
    %v870 = vand.u32 %v705, 4294901760
    %v871 = vsub.f32 %v705, %v870
    %v872 = vand.u32 %v871, 4294901760
    %873 = vmatmul.f32.gmra.mxu0 %v872
    %v874 = vpop.f32.mrf.mxu0
    %v875 = vadd.f32 %v844, %v874
    %876 = vdwg.mxu0
    %877 = vmatpush.xpose.msra.mxu0 0.0
    %878 = vmatpush.xpose.msra.mxu0 0.0
    %879 = vmatpush.xpose.msra.mxu0 0.0
    %880 = vmatpush.xpose.msra.mxu0 0.0
    %881 = vmatpush.xpose.msra.mxu0 0.0
    %882 = vmatpush.xpose.msra.mxu0 0.0
    %883 = vmatpush.xpose.msra.mxu0 0.0
    %884 = vmatpush.xpose.msra.mxu0 0.0
    %v885 = vand.u32 %v713, 4294901760
    %v886 = vsub.f32 %v713, %v885
    %v887 = vand.u32 %v886, 4294901760
    %888 = vmatpush.xpose.msra.mxu0 %v887
    %v889 = vand.u32 %v712, 4294901760
    %v890 = vsub.f32 %v712, %v889
    %v891 = vand.u32 %v890, 4294901760
    %892 = vmatpush.xpose.msra.mxu0 %v891
    %v893 = vand.u32 %v711, 4294901760
    %v894 = vsub.f32 %v711, %v893
    %v895 = vand.u32 %v894, 4294901760
    %896 = vmatpush.xpose.msra.mxu0 %v895
    %v897 = vand.u32 %v710, 4294901760
    %v898 = vsub.f32 %v710, %v897
    %v899 = vand.u32 %v898, 4294901760
    %900 = vmatpush.xpose.msra.mxu0 %v899
    %v901 = vand.u32 %v709, 4294901760
    %v902 = vsub.f32 %v709, %v901
    %v903 = vand.u32 %v902, 4294901760
    %904 = vmatpush.xpose.msra.mxu0 %v903
    %v905 = vand.u32 %v708, 4294901760
    %v906 = vsub.f32 %v708, %v905
    %v907 = vand.u32 %v906, 4294901760
    %908 = vmatpush.xpose.msra.mxu0 %v907
    %v909 = vand.u32 %v707, 4294901760
    %v910 = vsub.f32 %v707, %v909
    %v911 = vand.u32 %v910, 4294901760
    %912 = vmatpush.xpose.msra.mxu0 %v911
    %v913 = vand.u32 %v706, 4294901760
    %v914 = vsub.f32 %v706, %v913
    %v915 = vand.u32 %v914, 4294901760
    %916 = vmatpush.xpose.msra.mxu0 %v915
    %v917 = vand.u32 %v705, 4294901760
    %918 = vmatmul.f32.gmra.mxu0 %v917
    %v919 = vpop.f32.mrf.mxu0
    %v920 = vadd.f32 %v875, %v919
    %921 = vdwg.mxu0
    %922 = vmatpush.xpose.msra.mxu0 0.0
    %923 = vmatpush.xpose.msra.mxu0 0.0
    %924 = vmatpush.xpose.msra.mxu0 0.0
    %925 = vmatpush.xpose.msra.mxu0 0.0
    %926 = vmatpush.xpose.msra.mxu0 0.0
    %927 = vmatpush.xpose.msra.mxu0 0.0
    %928 = vmatpush.xpose.msra.mxu0 0.0
    %929 = vmatpush.xpose.msra.mxu0 0.0
    %v930 = vand.u32 %v713, 4294901760
    %931 = vmatpush.xpose.msra.mxu0 %v930
    %v932 = vand.u32 %v712, 4294901760
    %933 = vmatpush.xpose.msra.mxu0 %v932
    %v934 = vand.u32 %v711, 4294901760
    %935 = vmatpush.xpose.msra.mxu0 %v934
    %v936 = vand.u32 %v710, 4294901760
    %937 = vmatpush.xpose.msra.mxu0 %v936
    %v938 = vand.u32 %v709, 4294901760
    %939 = vmatpush.xpose.msra.mxu0 %v938
    %v940 = vand.u32 %v708, 4294901760
    %941 = vmatpush.xpose.msra.mxu0 %v940
    %v942 = vand.u32 %v707, 4294901760
    %943 = vmatpush.xpose.msra.mxu0 %v942
    %v944 = vand.u32 %v706, 4294901760
    %945 = vmatpush.xpose.msra.mxu0 %v944
    %v946 = vand.u32 %v705, 4294901760
    %947 = vmatmul.f32.gmra.mxu0 %v946
    %v948 = vpop.f32.mrf.mxu0
    %v949 = vadd.f32 %v920, %v948
    %950 = vdwg.mxu0
    %v951 = vmax.f32 %v949, 0.0
    %v952 = vld [vmem:[%s4] sm:$0xff]
    %v953 = vld [vmem:[%s4 + $0x8] sm:$0xff]
    %v955 = vsel %vm312, %v951, 0
    %v958 = vsel %vm312, %v952, 0
    %v961 = vsel %vm312, %v953, 0
    %963 = vmatpush.xpose.msra.mxu0 0.0
    %964 = vmatpush.xpose.msra.mxu0 0.0
    %965 = vmatpush.xpose.msra.mxu0 0.0
    %966 = vmatpush.xpose.msra.mxu0 0.0
    %967 = vmatpush.xpose.msra.mxu0 0.0
    %968 = vmatpush.xpose.msra.mxu0 0.0
    %969 = vmatpush.xpose.msra.mxu0 0.0
    %970 = vmatpush.xpose.msra.mxu0 0.0
    %971 = vmatpush.xpose.msra.mxu0 0.0
    %972 = vmatpush.xpose.msra.mxu0 0.0
    %973 = vmatpush.xpose.msra.mxu0 0.0
    %974 = vmatpush.xpose.msra.mxu0 0.0
    %975 = vmatpush.xpose.msra.mxu0 0.0
    %976 = vmatpush.xpose.msra.mxu0 0.0
    %v977 = vand.u32 %v961, 4294901760
    %978 = vmatpush.xpose.msra.mxu0 %v977
    %v979 = vand.u32 %v958, 4294901760
    %980 = vmatpush.xpose.msra.mxu0 %v979
    %v981 = vand.u32 %v955, 4294901760
    %v982 = vsub.f32 %v955, %v981
    %v983 = vand.u32 %v982, 4294901760
    %v984 = vsub.f32 %v982, %v983
    %v985 = vand.u32 %v984, 4294901760
    %986 = vmatmul.f32.gmra.mxu0 %v985
    %v987 = vpop.f32.mrf.mxu0
    %v988 = vadd.f32 0.0, %v987
    %989 = vdwg.mxu0
    %990 = vmatpush.xpose.msra.mxu0 0.0
    %991 = vmatpush.xpose.msra.mxu0 0.0
    %992 = vmatpush.xpose.msra.mxu0 0.0
    %993 = vmatpush.xpose.msra.mxu0 0.0
    %994 = vmatpush.xpose.msra.mxu0 0.0
    %995 = vmatpush.xpose.msra.mxu0 0.0
    %996 = vmatpush.xpose.msra.mxu0 0.0
    %997 = vmatpush.xpose.msra.mxu0 0.0
    %998 = vmatpush.xpose.msra.mxu0 0.0
    %999 = vmatpush.xpose.msra.mxu0 0.0
    %1000 = vmatpush.xpose.msra.mxu0 0.0
    %1001 = vmatpush.xpose.msra.mxu0 0.0
    %1002 = vmatpush.xpose.msra.mxu0 0.0
    %1003 = vmatpush.xpose.msra.mxu0 0.0
    %v1004 = vand.u32 %v961, 4294901760
    %v1005 = vsub.f32 %v961, %v1004
    %v1006 = vand.u32 %v1005, 4294901760
    %v1007 = vsub.f32 %v1005, %v1006
    %v1008 = vand.u32 %v1007, 4294901760
    %1009 = vmatpush.xpose.msra.mxu0 %v1008
    %v1010 = vand.u32 %v958, 4294901760
    %v1011 = vsub.f32 %v958, %v1010
    %v1012 = vand.u32 %v1011, 4294901760
    %v1013 = vsub.f32 %v1011, %v1012
    %v1014 = vand.u32 %v1013, 4294901760
    %1015 = vmatpush.xpose.msra.mxu0 %v1014
    %v1016 = vand.u32 %v955, 4294901760
    %1017 = vmatmul.f32.gmra.mxu0 %v1016
    %v1018 = vpop.f32.mrf.mxu0
    %v1019 = vadd.f32 %v988, %v1018
    %1020 = vdwg.mxu0
    %1021 = vmatpush.xpose.msra.mxu0 0.0
    %1022 = vmatpush.xpose.msra.mxu0 0.0
    %1023 = vmatpush.xpose.msra.mxu0 0.0
    %1024 = vmatpush.xpose.msra.mxu0 0.0
    %1025 = vmatpush.xpose.msra.mxu0 0.0
    %1026 = vmatpush.xpose.msra.mxu0 0.0
    %1027 = vmatpush.xpose.msra.mxu0 0.0
    %1028 = vmatpush.xpose.msra.mxu0 0.0
    %1029 = vmatpush.xpose.msra.mxu0 0.0
    %1030 = vmatpush.xpose.msra.mxu0 0.0
    %1031 = vmatpush.xpose.msra.mxu0 0.0
    %1032 = vmatpush.xpose.msra.mxu0 0.0
    %1033 = vmatpush.xpose.msra.mxu0 0.0
    %1034 = vmatpush.xpose.msra.mxu0 0.0
    %v1035 = vand.u32 %v961, 4294901760
    %v1036 = vsub.f32 %v961, %v1035
    %1037 = vmatpush.xpose.msra.mxu0 %v1036
    %v1038 = vand.u32 %v958, 4294901760
    %v1039 = vsub.f32 %v958, %v1038
    %1040 = vmatpush.xpose.msra.mxu0 %v1039
    %v1041 = vand.u32 %v955, 4294901760
    %v1042 = vsub.f32 %v955, %v1041
    %1043 = vmatmul.f32.gmra.mxu0 %v1042
    %v1044 = vpop.f32.mrf.mxu0
    %v1045 = vadd.f32 %v1019, %v1044
    %1046 = vdwg.mxu0
    %1047 = vmatpush.xpose.msra.mxu0 0.0
    %1048 = vmatpush.xpose.msra.mxu0 0.0
    %1049 = vmatpush.xpose.msra.mxu0 0.0
    %1050 = vmatpush.xpose.msra.mxu0 0.0
    %1051 = vmatpush.xpose.msra.mxu0 0.0
    %1052 = vmatpush.xpose.msra.mxu0 0.0
    %1053 = vmatpush.xpose.msra.mxu0 0.0
    %1054 = vmatpush.xpose.msra.mxu0 0.0
    %1055 = vmatpush.xpose.msra.mxu0 0.0
    %1056 = vmatpush.xpose.msra.mxu0 0.0
    %1057 = vmatpush.xpose.msra.mxu0 0.0
    %1058 = vmatpush.xpose.msra.mxu0 0.0
    %1059 = vmatpush.xpose.msra.mxu0 0.0
    %1060 = vmatpush.xpose.msra.mxu0 0.0
    %v1061 = vand.u32 %v961, 4294901760
    %1062 = vmatpush.xpose.msra.mxu0 %v1061
    %v1063 = vand.u32 %v958, 4294901760
    %1064 = vmatpush.xpose.msra.mxu0 %v1063
    %v1065 = vand.u32 %v955, 4294901760
    %v1066 = vsub.f32 %v955, %v1065
    %v1067 = vand.u32 %v1066, 4294901760
    %1068 = vmatmul.f32.gmra.mxu0 %v1067
    %v1069 = vpop.f32.mrf.mxu0
    %v1070 = vadd.f32 %v1045, %v1069
    %1071 = vdwg.mxu0
    %1072 = vmatpush.xpose.msra.mxu0 0.0
    %1073 = vmatpush.xpose.msra.mxu0 0.0
    %1074 = vmatpush.xpose.msra.mxu0 0.0
    %1075 = vmatpush.xpose.msra.mxu0 0.0
    %1076 = vmatpush.xpose.msra.mxu0 0.0
    %1077 = vmatpush.xpose.msra.mxu0 0.0
    %1078 = vmatpush.xpose.msra.mxu0 0.0
    %1079 = vmatpush.xpose.msra.mxu0 0.0
    %1080 = vmatpush.xpose.msra.mxu0 0.0
    %1081 = vmatpush.xpose.msra.mxu0 0.0
    %1082 = vmatpush.xpose.msra.mxu0 0.0
    %1083 = vmatpush.xpose.msra.mxu0 0.0
    %1084 = vmatpush.xpose.msra.mxu0 0.0
    %1085 = vmatpush.xpose.msra.mxu0 0.0
    %v1086 = vand.u32 %v961, 4294901760
    %v1087 = vsub.f32 %v961, %v1086
    %v1088 = vand.u32 %v1087, 4294901760
    %1089 = vmatpush.xpose.msra.mxu0 %v1088
    %v1090 = vand.u32 %v958, 4294901760
    %v1091 = vsub.f32 %v958, %v1090
    %v1092 = vand.u32 %v1091, 4294901760
    %1093 = vmatpush.xpose.msra.mxu0 %v1092
    %v1094 = vand.u32 %v955, 4294901760
    %1095 = vmatmul.f32.gmra.mxu0 %v1094
    %v1096 = vpop.f32.mrf.mxu0
    %v1097 = vadd.f32 %v1070, %v1096
    %1098 = vdwg.mxu0
    %1099 = vmatpush.xpose.msra.mxu0 0.0
    %1100 = vmatpush.xpose.msra.mxu0 0.0
    %1101 = vmatpush.xpose.msra.mxu0 0.0
    %1102 = vmatpush.xpose.msra.mxu0 0.0
    %1103 = vmatpush.xpose.msra.mxu0 0.0
    %1104 = vmatpush.xpose.msra.mxu0 0.0
    %1105 = vmatpush.xpose.msra.mxu0 0.0
    %1106 = vmatpush.xpose.msra.mxu0 0.0
    %1107 = vmatpush.xpose.msra.mxu0 0.0
    %1108 = vmatpush.xpose.msra.mxu0 0.0
    %1109 = vmatpush.xpose.msra.mxu0 0.0
    %1110 = vmatpush.xpose.msra.mxu0 0.0
    %1111 = vmatpush.xpose.msra.mxu0 0.0
    %1112 = vmatpush.xpose.msra.mxu0 0.0
    %v1113 = vand.u32 %v961, 4294901760
    %1114 = vmatpush.xpose.msra.mxu0 %v1113
    %v1115 = vand.u32 %v958, 4294901760
    %1116 = vmatpush.xpose.msra.mxu0 %v1115
    %v1117 = vand.u32 %v955, 4294901760
    %1118 = vmatmul.f32.gmra.mxu0 %v1117
    %v1119 = vpop.f32.mrf.mxu0
    %v1120 = vadd.f32 %v1097, %v1119
    %1121 = vdwg.mxu0
    %vm1122 = vcmask 130048
    %1123 = vst.msk [vmem:[#allocation2] sm:$0xff] %vm1122, %v1120
    // Predicated region
    $region22: #{tpu_custom_call.1} parent=1 // pred_check
      _
    $region23: #{tpu_custom_call.1} parent=1 // pred_check_branch
      %1125 = sbr.rel (0) target = $region25
    $region24: #{tpu_custom_call.1} parent=1 // pred_region
      %1127 = vsyncadd [#allocation3], 0
      %s1129 = sshll.u32 [#allocation2], 4
      %s1130 = int_to_ptr.vmem [resolvable:$true] %s1129
      %s1131 = sshll.u32 %s5, 4
      %s1132 = int_to_ptr.hbm [resolvable:$true] %s1131
      %1134 = dma.vmem_to_hbm [thread:$0]  %s1130, 128, %s1132, [#allocation3]
    $region25: #{tpu_custom_call.1} parent=1 // pred_fallthru
      _
    // Predicated region
    $region26: #{tpu_custom_call.1} parent=1 // pred_check
      _
    $region27: #{tpu_custom_call.1} parent=1 // pred_check_branch
      %1136 = sbr.rel (0) target = $region29
    $region28: #{tpu_custom_call.1} parent=1 // pred_region
      %1138 = dma.done [#allocation3], 128
    $region29: #{tpu_custom_call.1} parent=1 // pred_fallthru
      _
    %1139 = vsyncpa [#allocation3], 1

</llo_original>
